<compile_context>
chip_gen: v7x
topology: tpu7x:2x2x1
jax: 0.10.0
libtpu: 0.0.40
codegen_flags: <defaults>
</compile_context>

<pallas_src>
import functools
import math

import jax
import jax.numpy as jnp
from jax.experimental import pallas as pl
from jax.experimental.pallas import tpu as pltpu


def _patch_merging_kernel(x_ref, w_ref, b_ref, g_ref, beta_ref, o_ref, *,
                          inv_co, co_out):
    # x_ref:    (tile_r, 2, s2, 2C)     activations, kh taps on dim 1
    # w_ref:    (2, 2C, Co_pad)         bf16 conv weight, rows ordered (kw, c)
    # b/g/beta: (1, Co_pad)             f32 conv bias / LN gamma / LN beta
    # o_ref:    (tile_r * s2, co_out)   output tokens (co_out = Co or Co_pad)
    tile_r, _, s2, k2 = x_ref.shape
    tok = tile_r * s2

    # Load each kh tap straight from the ref (no full-block copy), cast to
    # bf16 for the MXU, accumulate in f32.
    x0 = x_ref[:, 0, :, :].astype(jnp.bfloat16).reshape(tok, k2)
    y = jnp.dot(x0, w_ref[0], preferred_element_type=jnp.float32)
    x1 = x_ref[:, 1, :, :].astype(jnp.bfloat16).reshape(tok, k2)
    y = y + jnp.dot(x1, w_ref[1], preferred_element_type=jnp.float32)
    y = y + b_ref[...]

    # One-pass LayerNorm statistics over the *real* Co channels: padded
    # weight/bias columns are zero, so padded lanes of y are exactly zero and
    # full-lane-width sums only need the real-channel divisor.  Clamp the
    # one-pass variance at zero (E[y^2] - mean^2 can cancel slightly negative).
    s1 = jnp.sum(y, axis=-1, keepdims=True)
    s2m = jnp.sum(y * y, axis=-1, keepdims=True)
    mean = s1 * inv_co
    var = jnp.maximum(s2m * inv_co - mean * mean, 0.0)
    inv = jax.lax.rsqrt(var + 1e-5)              # eps matches torch default

    out = (y - mean) * inv * g_ref[...] + beta_ref[...]
    o_ref[...] = out[:, :co_out].astype(o_ref.dtype)


def _divisors(n):
    ds = set()
    for i in range(1, int(math.isqrt(n)) + 1):
        if n % i == 0:
            ds.add(i)
            ds.add(n // i)
    return sorted(ds)


def _choose_tile_r(R, s2, fits, tok_hi, prefer_even_grid):
    """Pick tile_r for the row axis.

    Preference: a divisor of R (no row padding -> no extra HBM pass over x)
    whose output-row count tile_r*s2 is 8-aligned (BlockSpec sublane rule),
    fits the VMEM budget, is as large as possible up to ~tok_hi output
    tokens, 16-aligned for bf16 packing, and (on 2-TensorCore parts) keeps
    the grid length even for load balance.
    """
    divs = _divisors(R)
    aligned = [d for d in divs if (d * s2) % 8 == 0 and fits(d)]
    if aligned:
        def score(d):
            tok = d * s2
            g = R // d
            return (
                tok <= tok_hi,                                   # stay near target
                (not prefer_even_grid) or g == 1 or g % 2 == 0,  # balance 2 TCs
                tok % 16 == 0,                                   # bf16 sublanes
                tok if tok <= tok_hi else -tok,                  # as big as allowed
            )
        return max(aligned, key=score)
    if fits(R):
        return R  # single tile: full-extent output block needs no 8-row rule
    # Pathological shapes only (no aligned divisor fits and R itself is too
    # big): fall back to an aligned non-divisor tile; the wrapper pads rows.
    m = 8 // math.gcd(s2, 8)
    t = m
    while fits(t + m) and (t + m) * s2 <= tok_hi:
        t += m
    return t


def _vmem_capacity_bytes():
    try:
        cap = getattr(pltpu.get_tpu_info(), "vmem_capacity_bytes", None)
        if cap:
            return int(cap)
    except Exception:
        pass
    return 64 * 1024 * 1024  # conservative fallback (v7x-sized VMEM)


def patch_merging(x, conv_w, conv_b, ln_g, ln_b, *, out_dtype=None):
    """Fused Conv2d(k=2, s=2) + LayerNorm patch merging.

    x: (B, N, C) with N the square of an even side.  conv_w: (Co, C, 2, 2),
    conv_b / ln_g / ln_b: (Co,).  Returns (B, N//4, Co) in out_dtype
    (default: x.dtype; pass jnp.bfloat16 for bf16 consumers to halve output
    HBM write traffic).
    """
    B, N, C = x.shape
    size = int(math.isqrt(N))
    assert size * size == N and size % 2 == 0
    Co = conv_w.shape[0]
    s2 = size // 2
    M = s2 * s2
    out_dtype = x.dtype if out_dtype is None else jnp.dtype(out_dtype)

    lane = 128
    Co_pad = -(-Co // lane) * lane
    # Lane-dense padded compute; store only the real Co lanes when Co is not
    # 128-aligned so no separate post-kernel slice pass is ever needed.
    Co_out = Co_pad if Co_pad == Co else Co

    R = B * s2                                   # independent output rows
    x_isz = x.dtype.itemsize
    o_isz = out_dtype.itemsize

    # ---- generation-aware VMEM budget and tile target ----
    vmem_cap = _vmem_capacity_bytes()
    small_vmem = vmem_cap <= 64 * 1024 * 1024    # v7x-like: 2 TCs, 64 MiB VMEM
    vmem_limit = min(vmem_cap * 3 // 4, 96 * 1024 * 1024)
    tok_hi = 2048 if small_vmem else 4096        # target output tokens / step
    budget = int(vmem_limit * 0.7)               # headroom for Mosaic scratch

    def tile_bytes(tile_r):                      # VMEM incl. in-kernel temps
        tok = tile_r * s2
        in_blk = tile_r * 2 * s2 * 2 * C * x_isz
        out_blk = tok * Co_out * o_isz
        w_blk = 2 * 2 * C * Co_pad * 2
        vecs = 3 * Co_pad * 4
        temps = 2 * tok * 2 * C * 2 + 3 * tok * Co_pad * 4
        return 2 * (in_blk + out_blk + w_blk + vecs) + temps

    tile_r = _choose_tile_r(R, s2, lambda d: tile_bytes(d) <= budget,
                            tok_hi, prefer_even_grid=small_vmem)
    G = pl.cdiv(R, tile_r)
    R_pad = G * tile_r

    # ---- activations: metadata-only reshape; read from HBM exactly once ----
    x_r = x.reshape(R, 2, s2, 2 * C)             # (b*s2+oi, kh, oj, kw*C+c)
    if R_pad != R:                               # pathological shapes only
        x_r = jnp.pad(x_r, ((0, R_pad - R), (0, 0), (0, 0), (0, 0)))

    # ---- params: (kh, kw, c) ordering, lane-dense Co, bf16 weight ----
    w_mat = jnp.transpose(conv_w, (2, 3, 1, 0)).reshape(2, 2 * C, Co)
    b_row = conv_b.reshape(1, Co).astype(jnp.float32)
    g_row = ln_g.reshape(1, Co).astype(jnp.float32)
    be_row = ln_b.reshape(1, Co).astype(jnp.float32)
    if Co_pad != Co:
        pad = Co_pad - Co
        w_mat = jnp.pad(w_mat, ((0, 0), (0, 0), (0, pad)))
        b_row = jnp.pad(b_row, ((0, 0), (0, pad)))
        g_row = jnp.pad(g_row, ((0, 0), (0, pad)))
        be_row = jnp.pad(be_row, ((0, 0), (0, pad)))
    w_mat = w_mat.astype(jnp.bfloat16)

    kernel = functools.partial(_patch_merging_kernel, inv_co=1.0 / Co,
                               co_out=Co_out)

    cost = pl.CostEstimate(
        flops=2 * R_pad * s2 * (4 * C) * Co_pad,
        transcendentals=R_pad * s2,
        bytes_accessed=(x_r.size * x_isz
                        + w_mat.size * 2 + 3 * Co_pad * 4
                        + R_pad * s2 * Co_out * o_isz),
    )

    out = pl.pallas_call(
        kernel,
        out_shape=jax.ShapeDtypeStruct((R_pad * s2, Co_out), out_dtype),
        grid_spec=pltpu.PrefetchScalarGridSpec(
            num_scalar_prefetch=0,
            grid=(G,),
            in_specs=[
                # If a profile shows exposed input DMA at the chosen tile,
                # sweep pipeline_mode=pl.Buffered(3) here (keep 2 on v7x).
                pl.BlockSpec((tile_r, 2, s2, 2 * C), lambda i: (i, 0, 0, 0)),
                pl.BlockSpec((2, 2 * C, Co_pad), lambda i: (0, 0, 0)),
                pl.BlockSpec((1, Co_pad), lambda i: (0, 0)),
                pl.BlockSpec((1, Co_pad), lambda i: (0, 0)),
                pl.BlockSpec((1, Co_pad), lambda i: (0, 0)),
            ],
            out_specs=pl.BlockSpec((tile_r * s2, Co_out), lambda i: (i, 0)),
        ),
        compiler_params=pltpu.CompilerParams(
            dimension_semantics=("parallel",),
            vmem_limit_bytes=int(vmem_limit),
        ),
        cost_estimate=cost,
    )(x_r, w_mat, b_row, g_row, be_row)

    if R_pad != R:                               # drop row padding (rare path)
        out = out[: R * s2]
    return out.reshape(B, M, Co)


def _reference(x, conv_w, conv_b, ln_g, ln_b):
    # Independent reference: XLA conv (bf16 operands to mirror the MXU path,
    # f32 accumulation) + f32 LayerNorm.
    B, N, C = x.shape
    size = int(math.isqrt(N))
    Co = conv_w.shape[0]
    x_nchw = jnp.transpose(x, (0, 2, 1)).reshape(B, C, size, size)
    y = jax.lax.conv_general_dilated(
        x_nchw.astype(jnp.bfloat16), conv_w.astype(jnp.bfloat16),
        window_strides=(2, 2), padding="VALID",
        dimension_numbers=("NCHW", "OIHW", "NCHW"),
        preferred_element_type=jnp.float32)
    y = y + conv_b.reshape(1, Co, 1, 1)
    M = (size // 2) ** 2
    y = jnp.transpose(y.reshape(B, Co, M), (0, 2, 1))        # (B, M, Co)
    mean = jnp.mean(y, axis=-1, keepdims=True)
    var = jnp.mean((y - mean) ** 2, axis=-1, keepdims=True)
    return (y - mean) / jnp.sqrt(var + 1e-5) * ln_g + ln_b


if __name__ == "__main__":
    key = jax.random.PRNGKey(0)
    B, C, size, Co = 2, 4, 16, 8
    N = size * size

    k_x, k_w, k_b, k_g, k_be = jax.random.split(key, 5)
    x = jax.random.normal(k_x, (B, N, C), dtype=jnp.float32)
    # Shapes match nn.Conv2d(C, Co, kernel_size=2, stride=2) + nn.LayerNorm(Co).
    fan_in = C * 2 * 2
    bound = 1.0 / math.sqrt(fan_in)
    conv_w = jax.random.uniform(k_w, (Co, C, 2, 2), jnp.float32, -bound, bound)
    conv_b = jax.random.uniform(k_b, (Co,), jnp.float32, -bound, bound)
    ln_g = jnp.ones((Co,), jnp.float32) + 0.1 * jax.random.normal(k_g, (Co,), jnp.float32)
    ln_b = 0.1 * jax.random.normal(k_be, (Co,), jnp.float32)

    out = jax.block_until_ready(patch_merging(x, conv_w, conv_b, ln_g, ln_b))
    ref = _reference(x, conv_w, conv_b, ln_g, ln_b)

    assert out.shape == (B, N // 4, Co), out.shape
    max_err = float(jnp.max(jnp.abs(out - ref)))
    assert jnp.allclose(out, ref, atol=2e-3, rtol=2e-3), max_err

    print("KERNEL_OK")
</pallas_src>

<mosaic_0001>
module attributes {stable_mosaic.version = 11 : i64} {
  func.func @_patch_merging_kernel(%arg0: i32, %arg1: memref<16x2x8x8xf32, #tpu.memory_space<vmem>>, %arg2: memref<2x8x128xbf16, #tpu.memory_space<vmem>>, %arg3: memref<1x128xf32, #tpu.memory_space<vmem>>, %arg4: memref<1x128xf32, #tpu.memory_space<vmem>>, %arg5: memref<1x128xf32, #tpu.memory_space<vmem>>, %arg6: memref<128x8xf32, #tpu.memory_space<vmem>>) attributes {dimension_semantics = [#tpu.dimension_semantics<parallel>], iteration_bounds = array<i64: 1>, scalar_prefetch = 0 : i64, scratch_operands = 0 : i64, tpu.core_type = #tpu.core_type<tc>, window_params = [{transform_indices = @transform_0, window_bounds = array<i64: 16, 2, 8, 8>}, {pipeline_mode = #tpu.pipeline_mode<synchronous>, transform_indices = @transform_1, window_bounds = array<i64: 2, 8, 128>}, {pipeline_mode = #tpu.pipeline_mode<synchronous>, transform_indices = @transform_2, window_bounds = array<i64: 1, 128>}, {pipeline_mode = #tpu.pipeline_mode<synchronous>, transform_indices = @transform_3, window_bounds = array<i64: 1, 128>}, {pipeline_mode = #tpu.pipeline_mode<synchronous>, transform_indices = @transform_4, window_bounds = array<i64: 1, 128>}, {transform_indices = @transform_5, window_bounds = array<i64: 128, 8>}]} {
    %c0 = arith.constant 0 : index
    %c0_0 = arith.constant 0 : index
    %c0_1 = arith.constant 0 : index
    %c0_2 = arith.constant 0 : index
    %0 = vector.load %arg1[%c0, %c0_0, %c0_1, %c0_2] : memref<16x2x8x8xf32, #tpu.memory_space<vmem>>, vector<16x1x8x8xf32>
    %1 = vector.shape_cast %0 : vector<16x1x8x8xf32> to vector<16x8x8xf32>
    %2 = arith.truncf %1 : vector<16x8x8xf32> to vector<16x8x8xbf16>
    %3 = vector.shape_cast %2 : vector<16x8x8xbf16> to vector<128x8xbf16>
    %c0_3 = arith.constant 0 : index
    %c0_4 = arith.constant 0 : index
    %c0_5 = arith.constant 0 : index
    %4 = vector.load %arg2[%c0_3, %c0_4, %c0_5] : memref<2x8x128xbf16, #tpu.memory_space<vmem>>, vector<1x8x128xbf16>
    %5 = vector.shape_cast %4 : vector<1x8x128xbf16> to vector<8x128xbf16>
    %cst = arith.constant dense<0.000000e+00> : vector<128x128xf32>
    %6 = tpu.matmul %3, %5, %cst {dimension_numbers = #tpu.dot_dimension_numbers<[1], [0], [0], [1], [0, 0, 1, 1], [], []>} : vector<128x8xbf16>, vector<8x128xbf16>, vector<128x128xf32> -> vector<128x128xf32>
    %c0_6 = arith.constant 0 : index
    %c1 = arith.constant 1 : index
    %c0_7 = arith.constant 0 : index
    %c0_8 = arith.constant 0 : index
    %7 = vector.load %arg1[%c0_6, %c1, %c0_7, %c0_8] : memref<16x2x8x8xf32, #tpu.memory_space<vmem>>, vector<16x1x8x8xf32>
    %8 = vector.shape_cast %7 : vector<16x1x8x8xf32> to vector<16x8x8xf32>
    %9 = arith.truncf %8 : vector<16x8x8xf32> to vector<16x8x8xbf16>
    %10 = vector.shape_cast %9 : vector<16x8x8xbf16> to vector<128x8xbf16>
    %c1_9 = arith.constant 1 : index
    %c0_10 = arith.constant 0 : index
    %c0_11 = arith.constant 0 : index
    %11 = vector.load %arg2[%c1_9, %c0_10, %c0_11] : memref<2x8x128xbf16, #tpu.memory_space<vmem>>, vector<1x8x128xbf16>
    %12 = vector.shape_cast %11 : vector<1x8x128xbf16> to vector<8x128xbf16>
    %cst_12 = arith.constant dense<0.000000e+00> : vector<128x128xf32>
    %13 = tpu.matmul %10, %12, %cst_12 {dimension_numbers = #tpu.dot_dimension_numbers<[1], [0], [0], [1], [0, 0, 1, 1], [], []>} : vector<128x8xbf16>, vector<8x128xbf16>, vector<128x128xf32> -> vector<128x128xf32>
    %14 = arith.addf %6, %13 : vector<128x128xf32>
    %c0_13 = arith.constant 0 : index
    %c0_14 = arith.constant 0 : index
    %15 = vector.load %arg3[%c0_13, %c0_14] : memref<1x128xf32, #tpu.memory_space<vmem>>, vector<1x128xf32>
    %16 = vector.broadcast %15 : vector<1x128xf32> to vector<128x128xf32>
    %17 = arith.addf %14, %16 : vector<128x128xf32>
    %cst_15 = arith.constant dense<0.000000e+00> : vector<128xf32>
    %18 = vector.multi_reduction <add>, %17, %cst_15 [1] : vector<128x128xf32> to vector<128xf32>
    %19 = vector.shape_cast %18 : vector<128xf32> to vector<128x1xf32>
    %20 = arith.mulf %17, %17 : vector<128x128xf32>
    %cst_16 = arith.constant dense<0.000000e+00> : vector<128xf32>
    %21 = vector.multi_reduction <add>, %20, %cst_16 [1] : vector<128x128xf32> to vector<128xf32>
    %22 = vector.shape_cast %21 : vector<128xf32> to vector<128x1xf32>
    %cst_17 = arith.constant 1.250000e-01 : f32
    %23 = vector.broadcast %cst_17 : f32 to vector<128x1xf32>
    %24 = arith.mulf %19, %23 : vector<128x1xf32>
    %cst_18 = arith.constant 1.250000e-01 : f32
    %25 = vector.broadcast %cst_18 : f32 to vector<128x1xf32>
    %26 = arith.mulf %22, %25 : vector<128x1xf32>
    %27 = arith.mulf %24, %24 : vector<128x1xf32>
    %28 = arith.subf %26, %27 : vector<128x1xf32>
    %cst_19 = arith.constant 0.000000e+00 : f32
    %29 = vector.broadcast %cst_19 : f32 to vector<128x1xf32>
    %30 = arith.maximumf %28, %29 : vector<128x1xf32>
    %cst_20 = arith.constant 9.99999974E-6 : f32
    %31 = vector.broadcast %cst_20 : f32 to vector<128x1xf32>
    %32 = arith.addf %30, %31 : vector<128x1xf32>
    %33 = math.rsqrt %32 : vector<128x1xf32>
    %34 = vector.broadcast %24 : vector<128x1xf32> to vector<128x128xf32>
    %35 = arith.subf %17, %34 : vector<128x128xf32>
    %36 = vector.broadcast %33 : vector<128x1xf32> to vector<128x128xf32>
    %37 = arith.mulf %35, %36 : vector<128x128xf32>
    %c0_21 = arith.constant 0 : index
    %c0_22 = arith.constant 0 : index
    %38 = vector.load %arg4[%c0_21, %c0_22] : memref<1x128xf32, #tpu.memory_space<vmem>>, vector<1x128xf32>
    %39 = vector.broadcast %38 : vector<1x128xf32> to vector<128x128xf32>
    %40 = arith.mulf %37, %39 : vector<128x128xf32>
    %c0_23 = arith.constant 0 : index
    %c0_24 = arith.constant 0 : index
    %41 = vector.load %arg5[%c0_23, %c0_24] : memref<1x128xf32, #tpu.memory_space<vmem>>, vector<1x128xf32>
    %42 = vector.broadcast %41 : vector<1x128xf32> to vector<128x128xf32>
    %43 = arith.addf %40, %42 : vector<128x128xf32>
    %44 = vector.extract_strided_slice %43 {offsets = [0, 0], sizes = [128, 8], strides = [1, 1]} : vector<128x128xf32> to vector<128x8xf32>
    %c0_25 = arith.constant 0 : index
    %c0_26 = arith.constant 0 : index
    %45 = vector.load %arg6[%c0_25, %c0_26] : memref<128x8xf32, #tpu.memory_space<vmem>>, vector<128x8xf32>
    tpu.vector_store %arg6[%c0_25, %c0_26], %44 {strides = array<i32>} : memref<128x8xf32, #tpu.memory_space<vmem>>, vector<128x8xf32>,
    return
  }
  func.func @transform_0(%arg0: i32) -> (i32, i32, i32, i32) {
    %c0_i32 = arith.constant 0 : i32
    %c0_i32_0 = arith.constant 0 : i32
    %c0_i32_1 = arith.constant 0 : i32
    %c0_i32_2 = arith.constant 0 : i32
    return %arg0, %c0_i32, %c0_i32_0, %c0_i32_1 : i32, i32, i32, i32
  }
  func.func @transform_1(%arg0: i32) -> (i32, i32, i32) {
    %c0_i32 = arith.constant 0 : i32
    %c0_i32_0 = arith.constant 0 : i32
    %c0_i32_1 = arith.constant 0 : i32
    %c0_i32_2 = arith.constant 0 : i32
    return %c0_i32, %c0_i32_0, %c0_i32_1 : i32, i32, i32
  }
  func.func @transform_2(%arg0: i32) -> (i32, i32) {
    %c0_i32 = arith.constant 0 : i32
    %c0_i32_0 = arith.constant 0 : i32
    %c0_i32_1 = arith.constant 0 : i32
    return %c0_i32, %c0_i32_0 : i32, i32
  }
  func.func @transform_3(%arg0: i32) -> (i32, i32) {
    %c0_i32 = arith.constant 0 : i32
    %c0_i32_0 = arith.constant 0 : i32
    %c0_i32_1 = arith.constant 0 : i32
    return %c0_i32, %c0_i32_0 : i32, i32
  }
  func.func @transform_4(%arg0: i32) -> (i32, i32) {
    %c0_i32 = arith.constant 0 : i32
    %c0_i32_0 = arith.constant 0 : i32
    %c0_i32_1 = arith.constant 0 : i32
    return %c0_i32, %c0_i32_0 : i32, i32
  }
  func.func @transform_5(%arg0: i32) -> (i32, i32) {
    %c0_i32 = arith.constant 0 : i32
    %c0_i32_0 = arith.constant 0 : i32
    return %arg0, %c0_i32 : i32, i32
  }
}

</mosaic_0001>

<llo_original>
// kernel: tpu_custom_call.1
$region0: #{tpu_custom_call.1}
  #allocation0 [shape = 'u32[]', space=smem, size = 0x4, offset = 0x4, fixed_abs, tag = 'smem constant byte address 0x4 - core index']
  #allocation1 [shape = 'u32[144,128]{1,0:T(1,128)}', space=vmem, size = 0x12000, scoped, tag = 'internal scratch']
  %s0 = inlined_call_operand.vmem [shape: f32[16,2,8,8], index: 0, kind: input, shape index: {}]
  %s1 = inlined_call_operand.vmem [shape: bf16[2,8,128], index: 1, kind: input, shape index: {}]
  %s2 = inlined_call_operand.vmem [shape: f32[1,128], index: 2, kind: input, shape index: {}]
  %s3 = inlined_call_operand.vmem [shape: f32[1,128], index: 3, kind: input, shape index: {}]
  %s4 = inlined_call_operand.vmem [shape: f32[1,128], index: 4, kind: input, shape index: {}]
  %s5 = inlined_call_operand.vmem [shape: f32[128,8], index: 5, kind: output, shape index: {}]
  %s6 = sld [smem:[#allocation0]]
  $region30: #{tpu_custom_call.1} parent=0
    _
  %s8 = ssub.s32 1, %s6
  %s9 = scalar_select 0, %s8, %s6
  // Predicated region
  $region2: #{tpu_custom_call.1} parent=0 // pred_check
    _
  $region3: #{tpu_custom_call.1} parent=0 // pred_check_branch
    %11 = sbr.rel (0) target = $region5
  $region4: #{tpu_custom_call.1} parent=0 // pred_region
    _
  $region5: #{tpu_custom_call.1} parent=0 // pred_fallthru
    _
  // Predicated region
  $region6: #{tpu_custom_call.1} parent=0 // pred_check
    _
  $region7: #{tpu_custom_call.1} parent=0 // pred_check_branch
    %13 = sbr.rel (0) target = $region9
  $region8: #{tpu_custom_call.1} parent=0 // pred_region
    _
  $region9: #{tpu_custom_call.1} parent=0 // pred_fallthru
    _
  // Predicated region
  $region10: #{tpu_custom_call.1} parent=0 // pred_check
    _
  $region11: #{tpu_custom_call.1} parent=0 // pred_check_branch
    %15 = sbr.rel (0) target = $region13
  $region12: #{tpu_custom_call.1} parent=0 // pred_region
    _
  $region13: #{tpu_custom_call.1} parent=0 // pred_fallthru
    _
  // Predicated region
  $region14: #{tpu_custom_call.1} parent=0 // pred_check
    _
  $region15: #{tpu_custom_call.1} parent=0 // pred_check_branch
    %17 = sbr.rel (0) target = $region17
  $region16: #{tpu_custom_call.1} parent=0 // pred_region
    _
  $region17: #{tpu_custom_call.1} parent=0 // pred_fallthru
    _
  // Predicated region
  $region18: #{tpu_custom_call.1} parent=0 // pred_check
    _
  $region19: #{tpu_custom_call.1} parent=0 // pred_check_branch
    %19 = sbr.rel (0) target = $region21
  $region20: #{tpu_custom_call.1} parent=0 // pred_region
    _
  $region21: #{tpu_custom_call.1} parent=0 // pred_fallthru
    _
  %v21 = vld [vmem:[%s0] sm:$0xff]
  %v22 = vld [vmem:[%s0 + $0x10] sm:$0xff]
  %v23 = vld [vmem:[%s0 + $0x20] sm:$0xff]
  %v24 = vld [vmem:[%s0 + $0x30] sm:$0xff]
  %v25 = vld [vmem:[%s0 + $0x40] sm:$0xff]
  %v26 = vld [vmem:[%s0 + $0x50] sm:$0xff]
  %v27 = vld [vmem:[%s0 + $0x60] sm:$0xff]
  %v28 = vld [vmem:[%s0 + $0x70] sm:$0xff]
  %v29 = vld [vmem:[%s0 + $0x80] sm:$0xff]
  %v30 = vld [vmem:[%s0 + $0x90] sm:$0xff]
  %v31 = vld [vmem:[%s0 + $0xa0] sm:$0xff]
  %v32 = vld [vmem:[%s0 + $0xb0] sm:$0xff]
  %v33 = vld [vmem:[%s0 + $0xc0] sm:$0xff]
  %v34 = vld [vmem:[%s0 + $0xd0] sm:$0xff]
  %v35 = vld [vmem:[%s0 + $0xe0] sm:$0xff]
  %v36 = vld [vmem:[%s0 + $0xf0] sm:$0xff]
  %v37 = vpack.c.bf16 %v21, %v21
  %v38 = vpack.c.bf16 %v22, %v22
  %v39 = vpack.c.bf16 %v23, %v23
  %v40 = vpack.c.bf16 %v24, %v24
  %v41 = vpack.c.bf16 %v25, %v25
  %v42 = vpack.c.bf16 %v26, %v26
  %v43 = vpack.c.bf16 %v27, %v27
  %v44 = vpack.c.bf16 %v28, %v28
  %v45 = vpack.c.bf16 %v29, %v29
  %v46 = vpack.c.bf16 %v30, %v30
  %v47 = vpack.c.bf16 %v31, %v31
  %v48 = vpack.c.bf16 %v32, %v32
  %v49 = vpack.c.bf16 %v33, %v33
  %v50 = vpack.c.bf16 %v34, %v34
  %v51 = vpack.c.bf16 %v35, %v35
  %v52 = vpack.c.bf16 %v36, %v36
  %v53 = vld [vmem:[%s1] sm:$0xf]
  %s54 = scalar_lea.vmem %s0, 8
  %v55 = vld [vmem:[%s54] sm:$0xff]
  %v56 = vld [vmem:[%s54 + $0x10] sm:$0xff]
  %v57 = vld [vmem:[%s54 + $0x20] sm:$0xff]
  %v58 = vld [vmem:[%s54 + $0x30] sm:$0xff]
  %v59 = vld [vmem:[%s54 + $0x40] sm:$0xff]
  %v60 = vld [vmem:[%s54 + $0x50] sm:$0xff]
  %v61 = vld [vmem:[%s54 + $0x60] sm:$0xff]
  %v62 = vld [vmem:[%s54 + $0x70] sm:$0xff]
  %v63 = vld [vmem:[%s54 + $0x80] sm:$0xff]
  %v64 = vld [vmem:[%s54 + $0x90] sm:$0xff]
  %v65 = vld [vmem:[%s54 + $0xa0] sm:$0xff]
  %v66 = vld [vmem:[%s54 + $0xb0] sm:$0xff]
  %v67 = vld [vmem:[%s54 + $0xc0] sm:$0xff]
  %v68 = vld [vmem:[%s54 + $0xd0] sm:$0xff]
  %v69 = vld [vmem:[%s54 + $0xe0] sm:$0xff]
  %v70 = vld [vmem:[%s54 + $0xf0] sm:$0xff]
  %v71 = vpack.c.bf16 %v55, %v55
  %v72 = vpack.c.bf16 %v56, %v56
  %v73 = vpack.c.bf16 %v57, %v57
  %v74 = vpack.c.bf16 %v58, %v58
  %v75 = vpack.c.bf16 %v59, %v59
  %v76 = vpack.c.bf16 %v60, %v60
  %v77 = vpack.c.bf16 %v61, %v61
  %v78 = vpack.c.bf16 %v62, %v62
  %v79 = vpack.c.bf16 %v63, %v63
  %v80 = vpack.c.bf16 %v64, %v64
  %v81 = vpack.c.bf16 %v65, %v65
  %v82 = vpack.c.bf16 %v66, %v66
  %v83 = vpack.c.bf16 %v67, %v67
  %v84 = vpack.c.bf16 %v68, %v68
  %v85 = vpack.c.bf16 %v69, %v69
  %v86 = vpack.c.bf16 %v70, %v70
  %s87 = scalar_lea.vmem %s1, 4
  %v88 = vld [vmem:[%s87] sm:$0xf]
  %v105 = vunpack.c.l.b16 %v71
  %v106 = vunpack.c.l.b16 %v72
  %v107 = vunpack.c.l.b16 %v73
  %v108 = vunpack.c.l.b16 %v74
  %v109 = vunpack.c.l.b16 %v75
  %v110 = vunpack.c.l.b16 %v76
  %v111 = vunpack.c.l.b16 %v77
  %v112 = vunpack.c.l.b16 %v78
  %v113 = vunpack.c.l.b16 %v79
  %v114 = vunpack.c.l.b16 %v80
  %v115 = vunpack.c.l.b16 %v81
  %v116 = vunpack.c.l.b16 %v82
  %v117 = vunpack.c.l.b16 %v83
  %v118 = vunpack.c.l.b16 %v84
  %v119 = vunpack.c.l.b16 %v85
  %v120 = vunpack.c.l.b16 %v86
  %v121 = vpack.c.b16 %v106, %v105
  %v122 = vpack.c.b16 %v108, %v107
  %v123 = vpack.c.b16 %v110, %v109
  %v124 = vpack.c.b16 %v112, %v111
  %v125 = vpack.c.b16 %v114, %v113
  %v126 = vpack.c.b16 %v116, %v115
  %v127 = vpack.c.b16 %v118, %v117
  %v128 = vpack.c.b16 %v120, %v119
  %vm129 = vcmask 64512
  %v131 = vsel %vm129, %v121, 0
  %v134 = vsel %vm129, %v122, 0
  %v137 = vsel %vm129, %v123, 0
  %v140 = vsel %vm129, %v124, 0
  %v143 = vsel %vm129, %v125, 0
  %v146 = vsel %vm129, %v126, 0
  %v149 = vsel %vm129, %v127, 0
  %v152 = vsel %vm129, %v128, 0
  %vm154 = vcmask 1043456
  %v156 = vsel %vm154, %v88, 0
  %158 = vmatprep.subr.bf16.mxu0 0
  %159 = vmatpush1.bf16.msra.mxu0 %v156
  %160 = vmatprep.subr.bf16.mxu0 0
  %161 = vmatpush1.bf16.msra.mxu0 0
  %162 = vmatprep.subr.bf16.mxu0 0
  %163 = vmatpush1.bf16.msra.mxu0 0
  %164 = vmatprep.subr.bf16.mxu0 0
  %165 = vmatpush1.bf16.msra.mxu0 0
  %166 = vmatprep.subr.bf16.mxu0 0
  %167 = vmatpush1.bf16.msra.mxu0 0
  %168 = vmatprep.subr.bf16.mxu0 0
  %169 = vmatpush1.bf16.msra.mxu0 0
  %170 = vmatprep.subr.bf16.mxu0 0
  %171 = vmatpush1.bf16.msra.mxu0 0
  %172 = vmatprep.subr.bf16.mxu0 0
  %173 = vmatpush1.bf16.msra.mxu0 0
  %174 = vmatprep.subr.bf16.mxu0 0
  %175 = vmatpush1.bf16.msra.mxu0 0
  %176 = vmatprep.subr.bf16.mxu0 0
  %177 = vmatpush1.bf16.msra.mxu0 0
  %178 = vmatprep.subr.bf16.mxu0 0
  %179 = vmatpush1.bf16.msra.mxu0 0
  %180 = vmatprep.subr.bf16.mxu0 0
  %181 = vmatpush1.bf16.msra.mxu0 0
  %182 = vmatprep.subr.bf16.mxu0 0
  %183 = vmatpush1.bf16.msra.mxu0 0
  %184 = vmatprep.subr.bf16.mxu0 0
  %185 = vmatpush1.bf16.msra.mxu0 0
  %186 = vmatprep.subr.bf16.mxu0 0
  %187 = vmatpush1.bf16.msra.mxu0 0
  %188 = vmatprep.subr.bf16.mxu0 0
  %189 = vmatpush1.bf16.msra.mxu0 0
  %190 = vmatprep.mubr.bf16.mxu0 0
  %191 = vmatmul.mubr.bf16.gmra.mrb[0].mxu0 %v131
  %v192 = vpop.f32.mrb[0].mxu0
  %v193 = vadd.f32 0.0, %v192
  %v194 = vpop.f32.mrb[0].mxu0
  %v195 = vpop.f32.mrb[0].mxu0
  %v196 = vadd.f32 0.0, %v195
  %v197 = vpop.f32.mrb[0].mxu0
  %198 = vmatprep.mubr.bf16.mxu0 0
  %199 = vmatmul.mubr.bf16.gmra.mrb[0].mxu0 %v134
  %v200 = vpop.f32.mrb[0].mxu0
  %v201 = vadd.f32 0.0, %v200
  %v202 = vpop.f32.mrb[0].mxu0
  %v203 = vpop.f32.mrb[0].mxu0
  %v204 = vadd.f32 0.0, %v203
  %v205 = vpop.f32.mrb[0].mxu0
  %206 = vmatprep.mubr.bf16.mxu0 0
  %207 = vmatmul.mubr.bf16.gmra.mrb[0].mxu0 %v137
  %v208 = vpop.f32.mrb[0].mxu0
  %v209 = vadd.f32 0.0, %v208
  %v210 = vpop.f32.mrb[0].mxu0
  %v211 = vpop.f32.mrb[0].mxu0
  %v212 = vadd.f32 0.0, %v211
  %v213 = vpop.f32.mrb[0].mxu0
  %214 = vmatprep.mubr.bf16.mxu0 0
  %215 = vmatmul.mubr.bf16.gmra.mrb[0].mxu0 %v140
  %v216 = vpop.f32.mrb[0].mxu0
  %v217 = vadd.f32 0.0, %v216
  %v218 = vpop.f32.mrb[0].mxu0
  %v219 = vpop.f32.mrb[0].mxu0
  %v220 = vadd.f32 0.0, %v219
  %v221 = vpop.f32.mrb[0].mxu0
  %222 = vmatprep.mubr.bf16.mxu0 0
  %223 = vmatmul.mubr.bf16.gmra.mrb[0].mxu0 %v143
  %v224 = vpop.f32.mrb[0].mxu0
  %v225 = vadd.f32 0.0, %v224
  %v226 = vpop.f32.mrb[0].mxu0
  %v227 = vpop.f32.mrb[0].mxu0
  %v228 = vadd.f32 0.0, %v227
  %v229 = vpop.f32.mrb[0].mxu0
  %230 = vmatprep.mubr.bf16.mxu0 0
  %231 = vmatmul.mubr.bf16.gmra.mrb[0].mxu0 %v146
  %v232 = vpop.f32.mrb[0].mxu0
  %v233 = vadd.f32 0.0, %v232
  %v234 = vpop.f32.mrb[0].mxu0
  %v235 = vpop.f32.mrb[0].mxu0
  %v236 = vadd.f32 0.0, %v235
  %v237 = vpop.f32.mrb[0].mxu0
  %238 = vmatprep.mubr.bf16.mxu0 0
  %239 = vmatmul.mubr.bf16.gmra.mrb[0].mxu0 %v149
  %v240 = vpop.f32.mrb[0].mxu0
  %v241 = vadd.f32 0.0, %v240
  %v242 = vpop.f32.mrb[0].mxu0
  %v243 = vpop.f32.mrb[0].mxu0
  %v244 = vadd.f32 0.0, %v243
  %v245 = vpop.f32.mrb[0].mxu0
  %246 = vmatprep.mubr.bf16.mxu0 0
  %247 = vmatmul.mubr.bf16.gmra.mrb[0].mxu0 %v152
  %v248 = vpop.f32.mrb[0].mxu0
  %v249 = vadd.f32 0.0, %v248
  %v250 = vpop.f32.mrb[0].mxu0
  %v251 = vpop.f32.mrb[0].mxu0
  %v252 = vadd.f32 0.0, %v251
  %v253 = vpop.f32.mrb[0].mxu0
  %254 = vdwg.mxu0
  %v271 = vunpack.c.l.b16 %v37
  %v272 = vunpack.c.l.b16 %v38
  %v273 = vunpack.c.l.b16 %v39
  %v274 = vunpack.c.l.b16 %v40
  %v275 = vunpack.c.l.b16 %v41
  %v276 = vunpack.c.l.b16 %v42
  %v277 = vunpack.c.l.b16 %v43
  %v278 = vunpack.c.l.b16 %v44
  %v279 = vunpack.c.l.b16 %v45
  %v280 = vunpack.c.l.b16 %v46
  %v281 = vunpack.c.l.b16 %v47
  %v282 = vunpack.c.l.b16 %v48
  %v283 = vunpack.c.l.b16 %v49
  %v284 = vunpack.c.l.b16 %v50
  %v285 = vunpack.c.l.b16 %v51
  %v286 = vunpack.c.l.b16 %v52
  %v287 = vpack.c.b16 %v272, %v271
  %v288 = vpack.c.b16 %v274, %v273
  %v289 = vpack.c.b16 %v276, %v275
  %v290 = vpack.c.b16 %v278, %v277
  %v291 = vpack.c.b16 %v280, %v279
  %v292 = vpack.c.b16 %v282, %v281
  %v293 = vpack.c.b16 %v284, %v283
  %v294 = vpack.c.b16 %v286, %v285
  %v296 = vsel %vm129, %v287, 0
  %v299 = vsel %vm129, %v288, 0
  %v302 = vsel %vm129, %v289, 0
  %v305 = vsel %vm129, %v290, 0
  %v308 = vsel %vm129, %v291, 0
  %v311 = vsel %vm129, %v292, 0
  %v314 = vsel %vm129, %v293, 0
  %v317 = vsel %vm129, %v294, 0
  %v320 = vsel %vm154, %v53, 0
  %322 = vmatprep.subr.bf16.mxu0 0
  %323 = vmatpush1.bf16.msra.mxu0 %v320
  %324 = vmatprep.subr.bf16.mxu0 0
  %325 = vmatpush1.bf16.msra.mxu0 0
  %326 = vmatprep.subr.bf16.mxu0 0
  %327 = vmatpush1.bf16.msra.mxu0 0
  %328 = vmatprep.subr.bf16.mxu0 0
  %329 = vmatpush1.bf16.msra.mxu0 0
  %330 = vmatprep.subr.bf16.mxu0 0
  %331 = vmatpush1.bf16.msra.mxu0 0
  %332 = vmatprep.subr.bf16.mxu0 0
  %333 = vmatpush1.bf16.msra.mxu0 0
  %334 = vmatprep.subr.bf16.mxu0 0
  %335 = vmatpush1.bf16.msra.mxu0 0
  %336 = vmatprep.subr.bf16.mxu0 0
  %337 = vmatpush1.bf16.msra.mxu0 0
  %338 = vmatprep.subr.bf16.mxu0 0
  %339 = vmatpush1.bf16.msra.mxu0 0
  %340 = vmatprep.subr.bf16.mxu0 0
  %341 = vmatpush1.bf16.msra.mxu0 0
  %342 = vmatprep.subr.bf16.mxu0 0
  %343 = vmatpush1.bf16.msra.mxu0 0
  %344 = vmatprep.subr.bf16.mxu0 0
  %345 = vmatpush1.bf16.msra.mxu0 0
  %346 = vmatprep.subr.bf16.mxu0 0
  %347 = vmatpush1.bf16.msra.mxu0 0
  %348 = vmatprep.subr.bf16.mxu0 0
  %349 = vmatpush1.bf16.msra.mxu0 0
  %350 = vmatprep.subr.bf16.mxu0 0
  %351 = vmatpush1.bf16.msra.mxu0 0
  %352 = vmatprep.subr.bf16.mxu0 0
  %353 = vmatpush1.bf16.msra.mxu0 0
  %354 = vmatprep.mubr.bf16.mxu0 0
  %355 = vmatmul.mubr.bf16.gmra.mrb[0].mxu0 %v296
  %v356 = vpop.f32.mrb[0].mxu0
  %v357 = vadd.f32 %v193, %v356
  %v358 = vpop.f32.mrb[0].mxu0
  %v359 = vpop.f32.mrb[0].mxu0
  %v360 = vadd.f32 %v196, %v359
  %v361 = vpop.f32.mrb[0].mxu0
  %362 = vmatprep.mubr.bf16.mxu0 0
  %363 = vmatmul.mubr.bf16.gmra.mrb[0].mxu0 %v299
  %v364 = vpop.f32.mrb[0].mxu0
  %v365 = vadd.f32 %v201, %v364
  %v366 = vpop.f32.mrb[0].mxu0
  %v367 = vpop.f32.mrb[0].mxu0
  %v368 = vadd.f32 %v204, %v367
  %v369 = vpop.f32.mrb[0].mxu0
  %370 = vmatprep.mubr.bf16.mxu0 0
  %371 = vmatmul.mubr.bf16.gmra.mrb[0].mxu0 %v302
  %v372 = vpop.f32.mrb[0].mxu0
  %v373 = vadd.f32 %v209, %v372
  %v374 = vpop.f32.mrb[0].mxu0
  %v375 = vpop.f32.mrb[0].mxu0
  %v376 = vadd.f32 %v212, %v375
  %v377 = vpop.f32.mrb[0].mxu0
  %378 = vmatprep.mubr.bf16.mxu0 0
  %379 = vmatmul.mubr.bf16.gmra.mrb[0].mxu0 %v305
  %v380 = vpop.f32.mrb[0].mxu0
  %v381 = vadd.f32 %v217, %v380
  %v382 = vpop.f32.mrb[0].mxu0
  %v383 = vpop.f32.mrb[0].mxu0
  %v384 = vadd.f32 %v220, %v383
  %v385 = vpop.f32.mrb[0].mxu0
  %386 = vmatprep.mubr.bf16.mxu0 0
  %387 = vmatmul.mubr.bf16.gmra.mrb[0].mxu0 %v308
  %v388 = vpop.f32.mrb[0].mxu0
  %v389 = vadd.f32 %v225, %v388
  %v390 = vpop.f32.mrb[0].mxu0
  %v391 = vpop.f32.mrb[0].mxu0
  %v392 = vadd.f32 %v228, %v391
  %v393 = vpop.f32.mrb[0].mxu0
  %394 = vmatprep.mubr.bf16.mxu0 0
  %395 = vmatmul.mubr.bf16.gmra.mrb[0].mxu0 %v311
  %v396 = vpop.f32.mrb[0].mxu0
  %v397 = vadd.f32 %v233, %v396
  %v398 = vpop.f32.mrb[0].mxu0
  %v399 = vpop.f32.mrb[0].mxu0
  %v400 = vadd.f32 %v236, %v399
  %v401 = vpop.f32.mrb[0].mxu0
  %402 = vmatprep.mubr.bf16.mxu0 0
  %403 = vmatmul.mubr.bf16.gmra.mrb[0].mxu0 %v314
  %v404 = vpop.f32.mrb[0].mxu0
  %v405 = vadd.f32 %v241, %v404
  %v406 = vpop.f32.mrb[0].mxu0
  %v407 = vpop.f32.mrb[0].mxu0
  %v408 = vadd.f32 %v244, %v407
  %v409 = vpop.f32.mrb[0].mxu0
  %410 = vmatprep.mubr.bf16.mxu0 0
  %411 = vmatmul.mubr.bf16.gmra.mrb[0].mxu0 %v317
  %v412 = vpop.f32.mrb[0].mxu0
  %v413 = vadd.f32 %v249, %v412
  %v414 = vpop.f32.mrb[0].mxu0
  %v415 = vpop.f32.mrb[0].mxu0
  %v416 = vadd.f32 %v252, %v415
  %v417 = vpop.f32.mrb[0].mxu0
  %418 = vdwg.mxu0
  %v419 = vld [vmem:[%s2] sm:$0x1]
  %v421 = vlaneseq
  %v422 = vshrl.u32 %v421, 7
  %v423 = vsub.s32 0, %v422
  %v424 = vrot.slane %v419, %v423
  %v426 = vadd.f32 %v357, %v424
  %v427 = vadd.f32 %v360, %v424
  %v428 = vadd.f32 %v365, %v424
  %v429 = vadd.f32 %v368, %v424
  %v430 = vadd.f32 %v373, %v424
  %v431 = vadd.f32 %v376, %v424
  %v432 = vadd.f32 %v381, %v424
  %v433 = vadd.f32 %v384, %v424
  %v434 = vadd.f32 %v389, %v424
  %v435 = vadd.f32 %v392, %v424
  %v436 = vadd.f32 %v397, %v424
  %v437 = vadd.f32 %v400, %v424
  %v438 = vadd.f32 %v405, %v424
  %v439 = vadd.f32 %v408, %v424
  %v440 = vadd.f32 %v413, %v424
  %v441 = vadd.f32 %v416, %v424
  %442 = vadd.xlane.f32.xlu0 %v426
  %v443 = vpop.xlane.xlu0 %442
  %444 = vadd.xlane.f32.xlu0 %v427
  %v445 = vpop.xlane.xlu0 %444
  %446 = vadd.xlane.f32.xlu0 %v428
  %v447 = vpop.xlane.xlu0 %446
  %448 = vadd.xlane.f32.xlu0 %v429
  %v449 = vpop.xlane.xlu0 %448
  %450 = vadd.xlane.f32.xlu0 %v430
  %v451 = vpop.xlane.xlu0 %450
  %452 = vadd.xlane.f32.xlu0 %v431
  %v453 = vpop.xlane.xlu0 %452
  %454 = vadd.xlane.f32.xlu0 %v432
  %v455 = vpop.xlane.xlu0 %454
  %456 = vadd.xlane.f32.xlu0 %v433
  %v457 = vpop.xlane.xlu0 %456
  %458 = vadd.xlane.f32.xlu0 %v434
  %v459 = vpop.xlane.xlu0 %458
  %460 = vadd.xlane.f32.xlu0 %v435
  %v461 = vpop.xlane.xlu0 %460
  %462 = vadd.xlane.f32.xlu0 %v436
  %v463 = vpop.xlane.xlu0 %462
  %464 = vadd.xlane.f32.xlu0 %v437
  %v465 = vpop.xlane.xlu0 %464
  %466 = vadd.xlane.f32.xlu0 %v438
  %v467 = vpop.xlane.xlu0 %466
  %468 = vadd.xlane.f32.xlu0 %v439
  %v469 = vpop.xlane.xlu0 %468
  %470 = vadd.xlane.f32.xlu0 %v440
  %v471 = vpop.xlane.xlu0 %470
  %472 = vadd.xlane.f32.xlu0 %v441
  %v473 = vpop.xlane.xlu0 %472
  %v474 = vmul.f32 %v426, %v426
  %v475 = vmul.f32 %v427, %v427
  %v476 = vmul.f32 %v428, %v428
  %v477 = vmul.f32 %v429, %v429
  %v478 = vmul.f32 %v430, %v430
  %v479 = vmul.f32 %v431, %v431
  %v480 = vmul.f32 %v432, %v432
  %v481 = vmul.f32 %v433, %v433
  %v482 = vmul.f32 %v434, %v434
  %v483 = vmul.f32 %v435, %v435
  %v484 = vmul.f32 %v436, %v436
  %v485 = vmul.f32 %v437, %v437
  %v486 = vmul.f32 %v438, %v438
  %v487 = vmul.f32 %v439, %v439
  %v488 = vmul.f32 %v440, %v440
  %v489 = vmul.f32 %v441, %v441
  %490 = vadd.xlane.f32.xlu0 %v474
  %v491 = vpop.xlane.xlu0 %490
  %492 = vadd.xlane.f32.xlu0 %v475
  %v493 = vpop.xlane.xlu0 %492
  %494 = vadd.xlane.f32.xlu0 %v476
  %v495 = vpop.xlane.xlu0 %494
  %496 = vadd.xlane.f32.xlu0 %v477
  %v497 = vpop.xlane.xlu0 %496
  %498 = vadd.xlane.f32.xlu0 %v478
  %v499 = vpop.xlane.xlu0 %498
  %500 = vadd.xlane.f32.xlu0 %v479
  %v501 = vpop.xlane.xlu0 %500
  %502 = vadd.xlane.f32.xlu0 %v480
  %v503 = vpop.xlane.xlu0 %502
  %504 = vadd.xlane.f32.xlu0 %v481
  %v505 = vpop.xlane.xlu0 %504
  %506 = vadd.xlane.f32.xlu0 %v482
  %v507 = vpop.xlane.xlu0 %506
  %508 = vadd.xlane.f32.xlu0 %v483
  %v509 = vpop.xlane.xlu0 %508
  %510 = vadd.xlane.f32.xlu0 %v484
  %v511 = vpop.xlane.xlu0 %510
  %512 = vadd.xlane.f32.xlu0 %v485
  %v513 = vpop.xlane.xlu0 %512
  %514 = vadd.xlane.f32.xlu0 %v486
  %v515 = vpop.xlane.xlu0 %514
  %516 = vadd.xlane.f32.xlu0 %v487
  %v517 = vpop.xlane.xlu0 %516
  %518 = vadd.xlane.f32.xlu0 %v488
  %v519 = vpop.xlane.xlu0 %518
  %520 = vadd.xlane.f32.xlu0 %v489
  %v521 = vpop.xlane.xlu0 %520
  %v522 = vmul.f32 %v443, 0.125
  %v523 = vmul.f32 %v445, 0.125
  %v524 = vmul.f32 %v447, 0.125
  %v525 = vmul.f32 %v449, 0.125
  %v526 = vmul.f32 %v451, 0.125
  %v527 = vmul.f32 %v453, 0.125
  %v528 = vmul.f32 %v455, 0.125
  %v529 = vmul.f32 %v457, 0.125
  %v530 = vmul.f32 %v459, 0.125
  %v531 = vmul.f32 %v461, 0.125
  %v532 = vmul.f32 %v463, 0.125
  %v533 = vmul.f32 %v465, 0.125
  %v534 = vmul.f32 %v467, 0.125
  %v535 = vmul.f32 %v469, 0.125
  %v536 = vmul.f32 %v471, 0.125
  %v537 = vmul.f32 %v473, 0.125
  %v538 = vmul.f32 %v491, 0.125
  %v539 = vmul.f32 %v493, 0.125
  %v540 = vmul.f32 %v495, 0.125
  %v541 = vmul.f32 %v497, 0.125
  %v542 = vmul.f32 %v499, 0.125
  %v543 = vmul.f32 %v501, 0.125
  %v544 = vmul.f32 %v503, 0.125
  %v545 = vmul.f32 %v505, 0.125
  %v546 = vmul.f32 %v507, 0.125
  %v547 = vmul.f32 %v509, 0.125
  %v548 = vmul.f32 %v511, 0.125
  %v549 = vmul.f32 %v513, 0.125
  %v550 = vmul.f32 %v515, 0.125
  %v551 = vmul.f32 %v517, 0.125
  %v552 = vmul.f32 %v519, 0.125
  %v553 = vmul.f32 %v521, 0.125
  %v554 = vmul.f32 %v522, %v522
  %v555 = vmul.f32 %v523, %v523
  %v556 = vmul.f32 %v524, %v524
  %v557 = vmul.f32 %v525, %v525
  %v558 = vmul.f32 %v526, %v526
  %v559 = vmul.f32 %v527, %v527
  %v560 = vmul.f32 %v528, %v528
  %v561 = vmul.f32 %v529, %v529
  %v562 = vmul.f32 %v530, %v530
  %v563 = vmul.f32 %v531, %v531
  %v564 = vmul.f32 %v532, %v532
  %v565 = vmul.f32 %v533, %v533
  %v566 = vmul.f32 %v534, %v534
  %v567 = vmul.f32 %v535, %v535
  %v568 = vmul.f32 %v536, %v536
  %v569 = vmul.f32 %v537, %v537
  %v570 = vsub.f32 %v538, %v554
  %v571 = vsub.f32 %v539, %v555
  %v572 = vsub.f32 %v540, %v556
  %v573 = vsub.f32 %v541, %v557
  %v574 = vsub.f32 %v542, %v558
  %v575 = vsub.f32 %v543, %v559
  %v576 = vsub.f32 %v544, %v560
  %v577 = vsub.f32 %v545, %v561
  %v578 = vsub.f32 %v546, %v562
  %v579 = vsub.f32 %v547, %v563
  %v580 = vsub.f32 %v548, %v564
  %v581 = vsub.f32 %v549, %v565
  %v582 = vsub.f32 %v550, %v566
  %v583 = vsub.f32 %v551, %v567
  %v584 = vsub.f32 %v552, %v568
  %v585 = vsub.f32 %v553, %v569
  %v586 = vmax.f32 %v570, 0.0
  %v587 = vmax.f32 %v571, 0.0
  %v588 = vmax.f32 %v572, 0.0
  %v589 = vmax.f32 %v573, 0.0
  %v590 = vmax.f32 %v574, 0.0
  %v591 = vmax.f32 %v575, 0.0
  %v592 = vmax.f32 %v576, 0.0
  %v593 = vmax.f32 %v577, 0.0
  %v594 = vmax.f32 %v578, 0.0
  %v595 = vmax.f32 %v579, 0.0
  %v596 = vmax.f32 %v580, 0.0
  %v597 = vmax.f32 %v581, 0.0
  %v598 = vmax.f32 %v582, 0.0
  %v599 = vmax.f32 %v583, 0.0
  %v600 = vmax.f32 %v584, 0.0
  %v601 = vmax.f32 %v585, 0.0
  %v602 = vadd.f32 %v586, 1e-05
  %v603 = vadd.f32 %v587, 1e-05
  %v604 = vadd.f32 %v588, 1e-05
  %v605 = vadd.f32 %v589, 1e-05
  %v606 = vadd.f32 %v590, 1e-05
  %v607 = vadd.f32 %v591, 1e-05
  %v608 = vadd.f32 %v592, 1e-05
  %v609 = vadd.f32 %v593, 1e-05
  %v610 = vadd.f32 %v594, 1e-05
  %v611 = vadd.f32 %v595, 1e-05
  %v612 = vadd.f32 %v596, 1e-05
  %v613 = vadd.f32 %v597, 1e-05
  %v614 = vadd.f32 %v598, 1e-05
  %v615 = vadd.f32 %v599, 1e-05
  %v616 = vadd.f32 %v600, 1e-05
  %v617 = vadd.f32 %v601, 1e-05
  %v618 = vrsqrt.pop %v602
  %v619 = vrsqrt.pop %v603
  %v620 = vrsqrt.pop %v604
  %v621 = vrsqrt.pop %v605
  %v622 = vrsqrt.pop %v606
  %v623 = vrsqrt.pop %v607
  %v624 = vrsqrt.pop %v608
  %v625 = vrsqrt.pop %v609
  %v626 = vrsqrt.pop %v610
  %v627 = vrsqrt.pop %v611
  %v628 = vrsqrt.pop %v612
  %v629 = vrsqrt.pop %v613
  %v630 = vrsqrt.pop %v614
  %v631 = vrsqrt.pop %v615
  %v632 = vrsqrt.pop %v616
  %v633 = vrsqrt.pop %v617
  %v634 = vsub.f32 %v426, %v522
  %v635 = vsub.f32 %v427, %v523
  %v636 = vsub.f32 %v428, %v524
  %v637 = vsub.f32 %v429, %v525
  %v638 = vsub.f32 %v430, %v526
  %v639 = vsub.f32 %v431, %v527
  %v640 = vsub.f32 %v432, %v528
  %v641 = vsub.f32 %v433, %v529
  %v642 = vsub.f32 %v434, %v530
  %v643 = vsub.f32 %v435, %v531
  %v644 = vsub.f32 %v436, %v532
  %v645 = vsub.f32 %v437, %v533
  %v646 = vsub.f32 %v438, %v534
  %v647 = vsub.f32 %v439, %v535
  %v648 = vsub.f32 %v440, %v536
  %v649 = vsub.f32 %v441, %v537
  %v650 = vmul.f32 %v634, %v618
  %v651 = vmul.f32 %v635, %v619
  %v652 = vmul.f32 %v636, %v620
  %v653 = vmul.f32 %v637, %v621
  %v654 = vmul.f32 %v638, %v622
  %v655 = vmul.f32 %v639, %v623
  %v656 = vmul.f32 %v640, %v624
  %v657 = vmul.f32 %v641, %v625
  %v658 = vmul.f32 %v642, %v626
  %v659 = vmul.f32 %v643, %v627
  %v660 = vmul.f32 %v644, %v628
  %v661 = vmul.f32 %v645, %v629
  %v662 = vmul.f32 %v646, %v630
  %v663 = vmul.f32 %v647, %v631
  %v664 = vmul.f32 %v648, %v632
  %v665 = vmul.f32 %v649, %v633
  %v666 = vld [vmem:[%s3] sm:$0x1]
  %v668 = vlaneseq
  %v669 = vshrl.u32 %v668, 7
  %v670 = vsub.s32 0, %v669
  %v671 = vrot.slane %v666, %v670
  %v673 = vmul.f32 %v650, %v671
  %v674 = vmul.f32 %v651, %v671
  %v675 = vmul.f32 %v652, %v671
  %v676 = vmul.f32 %v653, %v671
  %v677 = vmul.f32 %v654, %v671
  %v678 = vmul.f32 %v655, %v671
  %v679 = vmul.f32 %v656, %v671
  %v680 = vmul.f32 %v657, %v671
  %v681 = vmul.f32 %v658, %v671
  %v682 = vmul.f32 %v659, %v671
  %v683 = vmul.f32 %v660, %v671
  %v684 = vmul.f32 %v661, %v671
  %v685 = vmul.f32 %v662, %v671
  %v686 = vmul.f32 %v663, %v671
  %v687 = vmul.f32 %v664, %v671
  %v688 = vmul.f32 %v665, %v671
  %v689 = vld [vmem:[%s4] sm:$0x1]
  %v691 = vlaneseq
  %v692 = vshrl.u32 %v691, 7
  %v693 = vsub.s32 0, %v692
  %v694 = vrot.slane %v689, %v693
  %v696 = vadd.f32 %v673, %v694
  %v697 = vadd.f32 %v674, %v694
  %v698 = vadd.f32 %v675, %v694
  %v699 = vadd.f32 %v676, %v694
  %v700 = vadd.f32 %v677, %v694
  %v701 = vadd.f32 %v678, %v694
  %v702 = vadd.f32 %v679, %v694
  %v703 = vadd.f32 %v680, %v694
  %v704 = vadd.f32 %v681, %v694
  %v705 = vadd.f32 %v682, %v694
  %v706 = vadd.f32 %v683, %v694
  %v707 = vadd.f32 %v684, %v694
  %v708 = vadd.f32 %v685, %v694
  %v709 = vadd.f32 %v686, %v694
  %v710 = vadd.f32 %v687, %v694
  %v711 = vadd.f32 %v688, %v694
  %712 = vst.msk [vmem:[%s5] sm:$0xff] %vm129, %v696
  %713 = vst.msk [vmem:[%s5 + $0x8] sm:$0xff] %vm129, %v697
  %714 = vst.msk [vmem:[%s5 + $0x10] sm:$0xff] %vm129, %v698
  %715 = vst.msk [vmem:[%s5 + $0x18] sm:$0xff] %vm129, %v699
  %716 = vst.msk [vmem:[%s5 + $0x20] sm:$0xff] %vm129, %v700
  %717 = vst.msk [vmem:[%s5 + $0x28] sm:$0xff] %vm129, %v701
  %718 = vst.msk [vmem:[%s5 + $0x30] sm:$0xff] %vm129, %v702
  %719 = vst.msk [vmem:[%s5 + $0x38] sm:$0xff] %vm129, %v703
  %720 = vst.msk [vmem:[%s5 + $0x40] sm:$0xff] %vm129, %v704
  %721 = vst.msk [vmem:[%s5 + $0x48] sm:$0xff] %vm129, %v705
  %722 = vst.msk [vmem:[%s5 + $0x50] sm:$0xff] %vm129, %v706
  %723 = vst.msk [vmem:[%s5 + $0x58] sm:$0xff] %vm129, %v707
  %724 = vst.msk [vmem:[%s5 + $0x60] sm:$0xff] %vm129, %v708
  %725 = vst.msk [vmem:[%s5 + $0x68] sm:$0xff] %vm129, %v709
  %726 = vst.msk [vmem:[%s5 + $0x70] sm:$0xff] %vm129, %v710
  %727 = vst.msk [vmem:[%s5 + $0x78] sm:$0xff] %vm129, %v711
  // Predicated region
  $region22: #{tpu_custom_call.1} parent=0 // pred_check
    _
  $region23: #{tpu_custom_call.1} parent=0 // pred_check_branch
    %729 = sbr.rel (0) target = $region25
  $region24: #{tpu_custom_call.1} parent=0 // pred_region
    _
  $region25: #{tpu_custom_call.1} parent=0 // pred_fallthru
    _
  // Predicated region
  $region26: #{tpu_custom_call.1} parent=0 // pred_check
    _
  $region27: #{tpu_custom_call.1} parent=0 // pred_check_branch
    %731 = sbr.rel (0) target = $region29
  $region28: #{tpu_custom_call.1} parent=0 // pred_region
    _
  $region29: #{tpu_custom_call.1} parent=0 // pred_fallthru
    _

</llo_original>
